<compile_context>
chip_gen: v6e
topology: v6e:2x2x1
jax: 0.10.0
libtpu: 0.0.40
codegen_flags: <defaults>
</compile_context>

<pallas_src>
import functools

import jax
import jax.numpy as jnp
from jax.experimental import pallas as pl
from jax.experimental.pallas import tpu as pltpu

LANE = 128  # TPU lane width


def _round_up(n, m):
    return ((n + m - 1) // m) * m


def _pad2(a, rows, cols):
    r, c = a.shape
    return jnp.pad(a, ((0, rows - r), (0, cols - c)))


# --------------------------------------------------------------------------
# Kernel
# --------------------------------------------------------------------------
def actor_critic_kernel(x_ref,
                        w1_ref, b1_ref,                       # fused layer 1
                        wa2_ref, ba2_ref, wa3_ref, ba3_ref,   # actor
                        wc1a_ref, wc2_ref, bc2_ref,           # critic trunk
                        wc3_ref, bc3_ref,                     # critic head
                        out_ref, *, hp, action_dim):
    # x arrives as f32 (TB, state_dim); cast to bf16 in VMEM for the MXU.
    x = x_ref[...].astype(jnp.bfloat16)

    # ---- fused layer 1: x @ [Wa1 | Wc1_x]  -> (TB, 2*HP) f32 ----
    h1 = jnp.dot(x, w1_ref[...], preferred_element_type=jnp.float32) + b1_ref[...]
    ha = jnp.maximum(h1[:, :hp], 0.0)   # actor hidden-1 (post-ReLU)
    c1x = h1[:, hp:]                    # critic: x @ Wc1_x + bc1 (pre-act)

    # ---- actor layers 2, 3 ----
    ha = jnp.dot(ha.astype(jnp.bfloat16), wa2_ref[...],
                 preferred_element_type=jnp.float32) + ba2_ref[...]
    ha = jnp.maximum(ha, 0.0)
    act = jnp.tanh(jnp.dot(ha.astype(jnp.bfloat16), wa3_ref[...],
                           preferred_element_type=jnp.float32) + ba3_ref[...])
    # act: (TB, 128); lanes >= action_dim are exactly tanh(0) = 0.

    # ---- critic: concat(x, act) @ Wc1 == x@Wc1_x + act@Wc1_a (exact;
    #      padded rows of Wc1_a are zero) ----
    c = c1x + jnp.dot(act.astype(jnp.bfloat16), wc1a_ref[...],
                      preferred_element_type=jnp.float32)
    c = jnp.maximum(c, 0.0)
    c = jnp.dot(c.astype(jnp.bfloat16), wc2_ref[...],
                preferred_element_type=jnp.float32) + bc2_ref[...]
    c = jnp.maximum(c, 0.0)

    # ---- critic head (H -> 1): VPU multiply + lane reduction, no MXU ----
    crit = jnp.sum(c * wc3_ref[...], axis=-1, keepdims=True) + bc3_ref[0, 0]

    # Merge: act in lanes [0, A), value in lane A (lane-dense full-width vst).
    lane = jax.lax.broadcasted_iota(jnp.int32, act.shape, dimension=1)
    out_ref[...] = jnp.where(lane == action_dim, crit, act).astype(out_ref.dtype)


# --------------------------------------------------------------------------
# Parameter packing (done once, outside the hot path)
# --------------------------------------------------------------------------
def pack_params(p):
    """Zero-pad hidden/output feature dims to 128-lane tiles, fuse the two
    x-input layer-1 weights, keep the critic head as a (1, HP) f32 row, and
    cast MXU weights to bf16 (biases stay f32).  Returns traced weights and a
    STATIC tuple of dims."""
    state_dim, hidden = p["wa1"].shape
    action_dim = p["wa3"].shape[1]
    assert action_dim + 1 <= LANE, "merged output needs action_dim + 1 <= 128"

    HP = _round_up(hidden, LANE)
    OW = LANE
    bf16 = jnp.bfloat16

    # Fused layer-1 weight: x rows kept at state_dim (no lane padding of x).
    w1 = jnp.concatenate([_pad2(p["wa1"], state_dim, HP),
                          _pad2(p["wc1x"], state_dim, HP)], axis=1).astype(bf16)
    b1 = jnp.concatenate([_pad2(p["ba1"], 1, HP),
                          _pad2(p["bc1"], 1, HP)], axis=1)

    wa2 = _pad2(p["wa2"], HP, HP).astype(bf16)
    ba2 = _pad2(p["ba2"], 1, HP)
    wa3 = _pad2(p["wa3"], HP, OW).astype(bf16)
    ba3 = _pad2(p["ba3"], 1, OW)

    wc1a = _pad2(p["wc1a"], OW, HP).astype(bf16)   # rows indexed by padded act
    wc2 = _pad2(p["wc2"], HP, HP).astype(bf16)
    bc2 = _pad2(p["bc2"], 1, HP)
    wc3_row = _pad2(p["wc3"].T, 1, HP)             # (1, HP) f32, VPU head
    bc3 = p["bc3"].reshape(1, 1).astype(jnp.float32)

    weights = (w1, b1, wa2, ba2, wa3, ba3, wc1a, wc2, bc2, wc3_row, bc3)
    dims = (state_dim, action_dim, hidden, HP, OW)   # Python ints -> static
    return {"weights": weights, "dims": dims}


# --------------------------------------------------------------------------
# Wrapper
# --------------------------------------------------------------------------
@functools.partial(jax.jit, static_argnums=(2,), static_argnames=("block_batch",))
def _forward(x, weights, dims, *, block_batch=128):
    state_dim, action_dim, _hidden, HP, OW = dims
    batch = x.shape[0]

    # Batch tile: multiple of 16 (bf16 sublane packing), divides padded batch.
    TB = max(16, (min(block_batch, _round_up(batch, 16)) // 16) * 16)
    pb = _round_up(batch, TB)
    xp = jnp.pad(x, ((0, pb - batch), (0, 0))) if pb != batch else x

    def resident(a):  # full-array block, constant index -> stays in VMEM
        return pl.BlockSpec(a.shape, lambda i: (0, 0))

    flops = 2 * pb * (state_dim * 2 * HP      # fused layer 1
                      + 2 * HP * HP           # actor l2 + critic l2
                      + 2 * HP * OW           # actor l3 + critic act@Wc1_a
                      + HP)                   # critic head (VPU)
    bytes_accessed = (xp.size * xp.dtype.itemsize
                      + pb * OW * 2
                      + sum(int(w.size) * w.dtype.itemsize for w in weights))

    out = pl.pallas_call(
        functools.partial(actor_critic_kernel, hp=HP, action_dim=action_dim),
        out_shape=jax.ShapeDtypeStruct((pb, OW), jnp.bfloat16),
        grid_spec=pltpu.PrefetchScalarGridSpec(
            num_scalar_prefetch=0,
            grid=(pb // TB,),
            in_specs=[pl.BlockSpec((TB, state_dim), lambda i: (i, 0))]
                     + [resident(w) for w in weights],
            out_specs=pl.BlockSpec((TB, OW), lambda i: (i, 0)),
        ),
        compiler_params=pltpu.CompilerParams(
            dimension_semantics=("parallel",)),
        cost_estimate=pl.CostEstimate(flops=int(flops),
                                      transcendentals=int(pb * OW),
                                      bytes_accessed=int(bytes_accessed)),
    )(xp, *weights)

    act = out[:batch, :action_dim].astype(x.dtype)
    crit = out[:batch, action_dim:action_dim + 1].astype(x.dtype)
    return act, crit


def actor_critic_forward(x, packed, *, block_batch=128):
    # dims are plain Python ints and go in as a static argument (never traced).
    return _forward(x, packed["weights"], packed["dims"], block_batch=block_batch)


# --------------------------------------------------------------------------
# Params + reference
# --------------------------------------------------------------------------
def init_params(key, state_dim, action_dim, hidden):
    ks = jax.random.split(key, 7)

    def lin(k, fan_in, fan_out):
        w = jax.random.normal(k, (fan_in, fan_out), jnp.float32) / jnp.sqrt(fan_in)
        b = jnp.zeros((1, fan_out), jnp.float32)
        return w, b

    wa1, ba1 = lin(ks[0], state_dim, hidden)
    wa2, ba2 = lin(ks[1], hidden, hidden)
    wa3, ba3 = lin(ks[2], hidden, action_dim)
    wc1x, bc1 = lin(ks[3], state_dim, hidden)
    wc1a, _ = lin(ks[4], action_dim, hidden)
    wc2, bc2 = lin(ks[5], hidden, hidden)
    wc3, bc3 = lin(ks[6], hidden, 1)
    return dict(wa1=wa1, ba1=ba1, wa2=wa2, ba2=ba2, wa3=wa3, ba3=ba3,
                wc1x=wc1x, wc1a=wc1a, bc1=bc1, wc2=wc2, bc2=bc2,
                wc3=wc3, bc3=bc3)


def reference_forward(x, p):
    """Pure-JAX reference of the actor/critic, emulating bf16 MXU inputs with
    f32 accumulation (the kernel's numerics)."""
    bf = lambda a: a.astype(jnp.bfloat16).astype(jnp.float32)
    mm = lambda a, w: jnp.dot(bf(a), bf(w))
    h = jnp.maximum(mm(x, p["wa1"]) + p["ba1"], 0.0)
    h = jnp.maximum(mm(h, p["wa2"]) + p["ba2"], 0.0)
    act = jnp.tanh(mm(h, p["wa3"]) + p["ba3"])
    c = jnp.maximum(mm(x, p["wc1x"]) + mm(act, p["wc1a"]) + p["bc1"], 0.0)
    c = jnp.maximum(mm(c, p["wc2"]) + p["bc2"], 0.0)
    crit = jnp.dot(c, p["wc3"]) + p["bc3"]
    return act, crit


if __name__ == "__main__":
    batch, state_dim, action_dim, hidden = 128, 16, 4, 32

    key = jax.random.PRNGKey(0)
    k_x, k_p = jax.random.split(key)
    x = jax.random.normal(k_x, (batch, state_dim), jnp.float32)
    params = init_params(k_p, state_dim, action_dim, hidden)
    packed = pack_params(params)

    # Small batch on a single-TC chip -> grid=1 (block_batch >= batch).
    act, crit = actor_critic_forward(x, packed, block_batch=128)
    act, crit = jax.block_until_ready((act, crit))

    act_ref, crit_ref = reference_forward(x, params)
    assert act.shape == (batch, action_dim) and crit.shape == (batch, 1)
    assert jnp.allclose(act, act_ref, atol=2e-2, rtol=2e-2)
    assert jnp.allclose(crit, crit_ref, atol=2e-2, rtol=2e-2)

    print("KERNEL_OK")
</pallas_src>

<mosaic_0001>
module attributes {stable_mosaic.version = 11 : i64} {
  func.func @actor_critic_kernel(%arg0: i32, %arg1: memref<128x16xf32, #tpu.memory_space<vmem>>, %arg2: memref<16x256xbf16, #tpu.memory_space<vmem>>, %arg3: memref<1x256xf32, #tpu.memory_space<vmem>>, %arg4: memref<128x128xbf16, #tpu.memory_space<vmem>>, %arg5: memref<1x128xf32, #tpu.memory_space<vmem>>, %arg6: memref<128x128xbf16, #tpu.memory_space<vmem>>, %arg7: memref<1x128xf32, #tpu.memory_space<vmem>>, %arg8: memref<128x128xbf16, #tpu.memory_space<vmem>>, %arg9: memref<128x128xbf16, #tpu.memory_space<vmem>>, %arg10: memref<1x128xf32, #tpu.memory_space<vmem>>, %arg11: memref<1x128xf32, #tpu.memory_space<vmem>>, %arg12: memref<1x1xf32, #tpu.memory_space<vmem>>, %arg13: memref<128x128xbf16, #tpu.memory_space<vmem>>) attributes {dimension_semantics = [#tpu.dimension_semantics<parallel>], iteration_bounds = array<i64: 1>, scalar_prefetch = 0 : i64, scratch_operands = 0 : i64, tpu.core_type = #tpu.core_type<tc>, window_params = [{transform_indices = @transform_0, window_bounds = array<i64: 128, 16>}, {pipeline_mode = #tpu.pipeline_mode<synchronous>, transform_indices = @transform_1, window_bounds = array<i64: 16, 256>}, {pipeline_mode = #tpu.pipeline_mode<synchronous>, transform_indices = @transform_2, window_bounds = array<i64: 1, 256>}, {pipeline_mode = #tpu.pipeline_mode<synchronous>, transform_indices = @transform_3, window_bounds = array<i64: 128, 128>}, {pipeline_mode = #tpu.pipeline_mode<synchronous>, transform_indices = @transform_4, window_bounds = array<i64: 1, 128>}, {pipeline_mode = #tpu.pipeline_mode<synchronous>, transform_indices = @transform_5, window_bounds = array<i64: 128, 128>}, {pipeline_mode = #tpu.pipeline_mode<synchronous>, transform_indices = @transform_6, window_bounds = array<i64: 1, 128>}, {pipeline_mode = #tpu.pipeline_mode<synchronous>, transform_indices = @transform_7, window_bounds = array<i64: 128, 128>}, {pipeline_mode = #tpu.pipeline_mode<synchronous>, transform_indices = @transform_8, window_bounds = array<i64: 128, 128>}, {pipeline_mode = #tpu.pipeline_mode<synchronous>, transform_indices = @transform_9, window_bounds = array<i64: 1, 128>}, {pipeline_mode = #tpu.pipeline_mode<synchronous>, transform_indices = @transform_10, window_bounds = array<i64: 1, 128>}, {pipeline_mode = #tpu.pipeline_mode<synchronous>, transform_indices = @transform_11, window_bounds = array<i64: 1, 1>}, {transform_indices = @transform_12, window_bounds = array<i64: 128, 128>}]} {
    %c0 = arith.constant 0 : index
    %c0_0 = arith.constant 0 : index
    %0 = vector.load %arg1[%c0, %c0_0] : memref<128x16xf32, #tpu.memory_space<vmem>>, vector<128x16xf32>
    %1 = arith.truncf %0 : vector<128x16xf32> to vector<128x16xbf16>
    %c0_1 = arith.constant 0 : index
    %c0_2 = arith.constant 0 : index
    %2 = vector.load %arg2[%c0_1, %c0_2] : memref<16x256xbf16, #tpu.memory_space<vmem>>, vector<16x256xbf16>
    %cst = arith.constant dense<0.000000e+00> : vector<128x256xf32>
    %3 = tpu.matmul %1, %2, %cst {dimension_numbers = #tpu.dot_dimension_numbers<[1], [0], [0], [1], [0, 0, 1, 1], [], []>} : vector<128x16xbf16>, vector<16x256xbf16>, vector<128x256xf32> -> vector<128x256xf32>
    %c0_3 = arith.constant 0 : index
    %c0_4 = arith.constant 0 : index
    %4 = vector.load %arg3[%c0_3, %c0_4] : memref<1x256xf32, #tpu.memory_space<vmem>>, vector<1x256xf32>
    %5 = vector.broadcast %4 : vector<1x256xf32> to vector<128x256xf32>
    %6 = arith.addf %3, %5 : vector<128x256xf32>
    %7 = vector.extract_strided_slice %6 {offsets = [0, 0], sizes = [128, 128], strides = [1, 1]} : vector<128x256xf32> to vector<128x128xf32>
    %cst_5 = arith.constant 0.000000e+00 : f32
    %8 = vector.broadcast %cst_5 : f32 to vector<128x128xf32>
    %9 = arith.maximumf %7, %8 : vector<128x128xf32>
    %10 = vector.extract_strided_slice %6 {offsets = [0, 128], sizes = [128, 128], strides = [1, 1]} : vector<128x256xf32> to vector<128x128xf32>
    %11 = arith.truncf %9 : vector<128x128xf32> to vector<128x128xbf16>
    %c0_6 = arith.constant 0 : index
    %c0_7 = arith.constant 0 : index
    %12 = vector.load %arg4[%c0_6, %c0_7] : memref<128x128xbf16, #tpu.memory_space<vmem>>, vector<128x128xbf16>
    %cst_8 = arith.constant dense<0.000000e+00> : vector<128x128xf32>
    %13 = tpu.matmul %11, %12, %cst_8 {dimension_numbers = #tpu.dot_dimension_numbers<[1], [0], [0], [1], [0, 0, 1, 1], [], []>} : vector<128x128xbf16>, vector<128x128xbf16>, vector<128x128xf32> -> vector<128x128xf32>
    %c0_9 = arith.constant 0 : index
    %c0_10 = arith.constant 0 : index
    %14 = vector.load %arg5[%c0_9, %c0_10] : memref<1x128xf32, #tpu.memory_space<vmem>>, vector<1x128xf32>
    %15 = vector.broadcast %14 : vector<1x128xf32> to vector<128x128xf32>
    %16 = arith.addf %13, %15 : vector<128x128xf32>
    %cst_11 = arith.constant 0.000000e+00 : f32
    %17 = vector.broadcast %cst_11 : f32 to vector<128x128xf32>
    %18 = arith.maximumf %16, %17 : vector<128x128xf32>
    %19 = arith.truncf %18 : vector<128x128xf32> to vector<128x128xbf16>
    %c0_12 = arith.constant 0 : index
    %c0_13 = arith.constant 0 : index
    %20 = vector.load %arg6[%c0_12, %c0_13] : memref<128x128xbf16, #tpu.memory_space<vmem>>, vector<128x128xbf16>
    %cst_14 = arith.constant dense<0.000000e+00> : vector<128x128xf32>
    %21 = tpu.matmul %19, %20, %cst_14 {dimension_numbers = #tpu.dot_dimension_numbers<[1], [0], [0], [1], [0, 0, 1, 1], [], []>} : vector<128x128xbf16>, vector<128x128xbf16>, vector<128x128xf32> -> vector<128x128xf32>
    %c0_15 = arith.constant 0 : index
    %c0_16 = arith.constant 0 : index
    %22 = vector.load %arg7[%c0_15, %c0_16] : memref<1x128xf32, #tpu.memory_space<vmem>>, vector<1x128xf32>
    %23 = vector.broadcast %22 : vector<1x128xf32> to vector<128x128xf32>
    %24 = arith.addf %21, %23 : vector<128x128xf32>
    %25 = math.tanh %24 : vector<128x128xf32>
    %26 = arith.truncf %25 : vector<128x128xf32> to vector<128x128xbf16>
    %c0_17 = arith.constant 0 : index
    %c0_18 = arith.constant 0 : index
    %27 = vector.load %arg8[%c0_17, %c0_18] : memref<128x128xbf16, #tpu.memory_space<vmem>>, vector<128x128xbf16>
    %cst_19 = arith.constant dense<0.000000e+00> : vector<128x128xf32>
    %28 = tpu.matmul %26, %27, %cst_19 {dimension_numbers = #tpu.dot_dimension_numbers<[1], [0], [0], [1], [0, 0, 1, 1], [], []>} : vector<128x128xbf16>, vector<128x128xbf16>, vector<128x128xf32> -> vector<128x128xf32>
    %29 = arith.addf %10, %28 : vector<128x128xf32>
    %cst_20 = arith.constant 0.000000e+00 : f32
    %30 = vector.broadcast %cst_20 : f32 to vector<128x128xf32>
    %31 = arith.maximumf %29, %30 : vector<128x128xf32>
    %32 = arith.truncf %31 : vector<128x128xf32> to vector<128x128xbf16>
    %c0_21 = arith.constant 0 : index
    %c0_22 = arith.constant 0 : index
    %33 = vector.load %arg9[%c0_21, %c0_22] : memref<128x128xbf16, #tpu.memory_space<vmem>>, vector<128x128xbf16>
    %cst_23 = arith.constant dense<0.000000e+00> : vector<128x128xf32>
    %34 = tpu.matmul %32, %33, %cst_23 {dimension_numbers = #tpu.dot_dimension_numbers<[1], [0], [0], [1], [0, 0, 1, 1], [], []>} : vector<128x128xbf16>, vector<128x128xbf16>, vector<128x128xf32> -> vector<128x128xf32>
    %c0_24 = arith.constant 0 : index
    %c0_25 = arith.constant 0 : index
    %35 = vector.load %arg10[%c0_24, %c0_25] : memref<1x128xf32, #tpu.memory_space<vmem>>, vector<1x128xf32>
    %36 = vector.broadcast %35 : vector<1x128xf32> to vector<128x128xf32>
    %37 = arith.addf %34, %36 : vector<128x128xf32>
    %cst_26 = arith.constant 0.000000e+00 : f32
    %38 = vector.broadcast %cst_26 : f32 to vector<128x128xf32>
    %39 = arith.maximumf %37, %38 : vector<128x128xf32>
    %c0_27 = arith.constant 0 : index
    %c0_28 = arith.constant 0 : index
    %40 = vector.load %arg11[%c0_27, %c0_28] : memref<1x128xf32, #tpu.memory_space<vmem>>, vector<1x128xf32>
    %41 = vector.broadcast %40 : vector<1x128xf32> to vector<128x128xf32>
    %42 = arith.mulf %39, %41 : vector<128x128xf32>
    %cst_29 = arith.constant dense<0.000000e+00> : vector<128xf32>
    %43 = vector.multi_reduction <add>, %42, %cst_29 [1] : vector<128x128xf32> to vector<128xf32>
    %44 = vector.shape_cast %43 : vector<128xf32> to vector<128x1xf32>
    %c0_30 = arith.constant 0 : index
    %c0_31 = arith.constant 0 : index
    %45 = vector.load %arg12[%c0_30, %c0_31] : memref<1x1xf32, #tpu.memory_space<vmem>>, vector<1x1xf32>
    %46 = vector.extract %45[0, 0] : f32 from vector<1x1xf32>
    %47 = vector.broadcast %46 : f32 to vector<128x1xf32>
    %48 = arith.addf %44, %47 : vector<128x1xf32>
    %49 = tpu.iota {dimensions = array<i32: 1>} : vector<128x128xi32>
    %c4_i32 = arith.constant 4 : i32
    %50 = vector.broadcast %c4_i32 : i32 to vector<128x128xi32>
    %51 = arith.cmpi eq, %49, %50 : vector<128x128xi32>
    %52 = vector.shape_cast %48 : vector<128x1xf32> to vector<128x1xf32>
    %53 = vector.broadcast %52 : vector<128x1xf32> to vector<128x128xf32>
    %54 = arith.select %51, %53, %25 : vector<128x128xi1>, vector<128x128xf32>
    %55 = arith.truncf %54 : vector<128x128xf32> to vector<128x128xbf16>
    %c0_32 = arith.constant 0 : index
    %c0_33 = arith.constant 0 : index
    %56 = vector.load %arg13[%c0_32, %c0_33] : memref<128x128xbf16, #tpu.memory_space<vmem>>, vector<128x128xbf16>
    tpu.vector_store %arg13[%c0_32, %c0_33], %55 {strides = array<i32>} : memref<128x128xbf16, #tpu.memory_space<vmem>>, vector<128x128xbf16>,
    return
  }
  func.func @transform_0(%arg0: i32) -> (i32, i32) {
    %c0_i32 = arith.constant 0 : i32
    %c0_i32_0 = arith.constant 0 : i32
    return %arg0, %c0_i32 : i32, i32
  }
  func.func @transform_1(%arg0: i32) -> (i32, i32) {
    %c0_i32 = arith.constant 0 : i32
    %c0_i32_0 = arith.constant 0 : i32
    %c0_i32_1 = arith.constant 0 : i32
    return %c0_i32, %c0_i32_0 : i32, i32
  }
  func.func @transform_2(%arg0: i32) -> (i32, i32) {
    %c0_i32 = arith.constant 0 : i32
    %c0_i32_0 = arith.constant 0 : i32
    %c0_i32_1 = arith.constant 0 : i32
    return %c0_i32, %c0_i32_0 : i32, i32
  }
  func.func @transform_3(%arg0: i32) -> (i32, i32) {
    %c0_i32 = arith.constant 0 : i32
    %c0_i32_0 = arith.constant 0 : i32
    %c0_i32_1 = arith.constant 0 : i32
    return %c0_i32, %c0_i32_0 : i32, i32
  }
  func.func @transform_4(%arg0: i32) -> (i32, i32) {
    %c0_i32 = arith.constant 0 : i32
    %c0_i32_0 = arith.constant 0 : i32
    %c0_i32_1 = arith.constant 0 : i32
    return %c0_i32, %c0_i32_0 : i32, i32
  }
  func.func @transform_5(%arg0: i32) -> (i32, i32) {
    %c0_i32 = arith.constant 0 : i32
    %c0_i32_0 = arith.constant 0 : i32
    %c0_i32_1 = arith.constant 0 : i32
    return %c0_i32, %c0_i32_0 : i32, i32
  }
  func.func @transform_6(%arg0: i32) -> (i32, i32) {
    %c0_i32 = arith.constant 0 : i32
    %c0_i32_0 = arith.constant 0 : i32
    %c0_i32_1 = arith.constant 0 : i32
    return %c0_i32, %c0_i32_0 : i32, i32
  }
  func.func @transform_7(%arg0: i32) -> (i32, i32) {
    %c0_i32 = arith.constant 0 : i32
    %c0_i32_0 = arith.constant 0 : i32
    %c0_i32_1 = arith.constant 0 : i32
    return %c0_i32, %c0_i32_0 : i32, i32
  }
  func.func @transform_8(%arg0: i32) -> (i32, i32) {
    %c0_i32 = arith.constant 0 : i32
    %c0_i32_0 = arith.constant 0 : i32
    %c0_i32_1 = arith.constant 0 : i32
    return %c0_i32, %c0_i32_0 : i32, i32
  }
  func.func @transform_9(%arg0: i32) -> (i32, i32) {
    %c0_i32 = arith.constant 0 : i32
    %c0_i32_0 = arith.constant 0 : i32
    %c0_i32_1 = arith.constant 0 : i32
    return %c0_i32, %c0_i32_0 : i32, i32
  }
  func.func @transform_10(%arg0: i32) -> (i32, i32) {
    %c0_i32 = arith.constant 0 : i32
    %c0_i32_0 = arith.constant 0 : i32
    %c0_i32_1 = arith.constant 0 : i32
    return %c0_i32, %c0_i32_0 : i32, i32
  }
  func.func @transform_11(%arg0: i32) -> (i32, i32) {
    %c0_i32 = arith.constant 0 : i32
    %c0_i32_0 = arith.constant 0 : i32
    %c0_i32_1 = arith.constant 0 : i32
    return %c0_i32, %c0_i32_0 : i32, i32
  }
  func.func @transform_12(%arg0: i32) -> (i32, i32) {
    %c0_i32 = arith.constant 0 : i32
    %c0_i32_0 = arith.constant 0 : i32
    return %arg0, %c0_i32 : i32, i32
  }
}

</mosaic_0001>

<llo_original>
// kernel: _forward.1
$region0: #{_forward.1}
  #allocation0 [shape = 'u32[]', space=smem, size = 0x4, offset = 0x4, fixed_abs, tag = 'smem constant byte address 0x4 - core index']
  #allocation1 [shape = 'u32[144,128]{1,0:T(1,128)}', space=vmem, size = 0x12000, scoped, tag = 'internal scratch']
  #allocation2 [shape = 'f32[1,1]{1,0:T(1,128)S(1)}', space=vmem, size = 0x200, scoped, tag = 'scoped memory for _forward.1']
  %s0 = inlined_call_operand.vmem [shape: f32[128,16], index: 0, kind: input, shape index: {}]
  %s1 = inlined_call_operand.vmem [shape: bf16[16,256], index: 1, kind: input, shape index: {}]
  %s2 = inlined_call_operand.vmem [shape: f32[1,256], index: 2, kind: input, shape index: {}]
  %s3 = inlined_call_operand.vmem [shape: bf16[128,128], index: 3, kind: input, shape index: {}]
  %s4 = inlined_call_operand.vmem [shape: f32[1,128], index: 4, kind: input, shape index: {}]
  %s5 = inlined_call_operand.vmem [shape: bf16[128,128], index: 5, kind: input, shape index: {}]
  %s6 = inlined_call_operand.vmem [shape: f32[1,128], index: 6, kind: input, shape index: {}]
  %s7 = inlined_call_operand.hbm [shape: bf16[128,128], index: 7, kind: input, shape index: {}]
  %s8 = inlined_call_operand.hbm [shape: bf16[128,128], index: 8, kind: input, shape index: {}]
  %s9 = inlined_call_operand.vmem [shape: f32[1,128], index: 9, kind: input, shape index: {}]
  %s10 = inlined_call_operand.vmem [shape: f32[1,128], index: 10, kind: input, shape index: {}]
  %s11 = inlined_call_operand.<no memory space> [shape: f32[1,1], index: 11, kind: input, shape index: {}]
  %s12 = inlined_call_operand.vmem [shape: bf16[128,128], index: 12, kind: output, shape index: {}]
  %s13 = sld [smem:[#allocation0]]
  $region66: #{_forward.1} parent=0
    _
  %s15 = ssub.s32 1, %s13
  %s16 = scalar_select 0, %s15, %s13
  %v17 = vstv %s11
  %18 = vst [vmem:[#allocation2] sm:$0x1] %v17
  $region1: #{_forward.1} parent=0
    #allocation3 [shape = 'u8[32768]{0}', space=vmem, size = 0x8000, scoped, tag = 'input window, operand 7, single buffered']
    #allocation4 [shape = 's32[1]{0}', space=sflag, size = 0x4, scoped, tag = 'scoped memory for _forward.1']
    #allocation5 [shape = 'u8[32768]{0}', space=vmem, size = 0x8000, scoped, tag = 'input window, operand 8, single buffered']
    #allocation6 [shape = 's32[1]{0}', space=sflag, size = 0x4, scoped, tag = 'scoped memory for _forward.1']
    %19 = vsyncpa [#allocation4], 0
    %20 = vsyncpa [#allocation6], 0
    // Predicated region
    $region2: #{_forward.1} parent=1 // pred_check
      _
    $region3: #{_forward.1} parent=1 // pred_check_branch
      %22 = sbr.rel (0) target = $region5
    $region4: #{_forward.1} parent=1 // pred_region
      _
    $region5: #{_forward.1} parent=1 // pred_fallthru
      _
    // Predicated region
    $region6: #{_forward.1} parent=1 // pred_check
      _
    $region7: #{_forward.1} parent=1 // pred_check_branch
      %24 = sbr.rel (0) target = $region9
    $region8: #{_forward.1} parent=1 // pred_region
      _
    $region9: #{_forward.1} parent=1 // pred_fallthru
      _
    // Predicated region
    $region10: #{_forward.1} parent=1 // pred_check
      _
    $region11: #{_forward.1} parent=1 // pred_check_branch
      %26 = sbr.rel (0) target = $region13
    $region12: #{_forward.1} parent=1 // pred_region
      _
    $region13: #{_forward.1} parent=1 // pred_fallthru
      _
    // Predicated region
    $region14: #{_forward.1} parent=1 // pred_check
      _
    $region15: #{_forward.1} parent=1 // pred_check_branch
      %28 = sbr.rel (0) target = $region17
    $region16: #{_forward.1} parent=1 // pred_region
      _
    $region17: #{_forward.1} parent=1 // pred_fallthru
      _
    // Predicated region
    $region18: #{_forward.1} parent=1 // pred_check
      _
    $region19: #{_forward.1} parent=1 // pred_check_branch
      %30 = sbr.rel (0) target = $region21
    $region20: #{_forward.1} parent=1 // pred_region
      _
    $region21: #{_forward.1} parent=1 // pred_fallthru
      _
    // Predicated region
    $region22: #{_forward.1} parent=1 // pred_check
      _
    $region23: #{_forward.1} parent=1 // pred_check_branch
      %32 = sbr.rel (0) target = $region25
    $region24: #{_forward.1} parent=1 // pred_region
      _
    $region25: #{_forward.1} parent=1 // pred_fallthru
      _
    // Predicated region
    $region26: #{_forward.1} parent=1 // pred_check
      _
    $region27: #{_forward.1} parent=1 // pred_check_branch
      %34 = sbr.rel (0) target = $region29
    $region28: #{_forward.1} parent=1 // pred_region
      _
    $region29: #{_forward.1} parent=1 // pred_fallthru
      _
    // Predicated region
    $region30: #{_forward.1} parent=1 // pred_check
      _
    $region31: #{_forward.1} parent=1 // pred_check_branch
      %36 = sbr.rel (0) target = $region33
    $region32: #{_forward.1} parent=1 // pred_region
      %s38 = ssub.s32 1024, 1024
      %39 = vsyncadd [#allocation4], %s38
      %s40 = sshll.u32 [#allocation3], 4
      %s41 = int_to_ptr.vmem [resolvable:$true] %s40
      %46 = dma.hbm_to_vmem [thread:$0]  %s7, 1024, %s41, [#allocation4], 64, 64, 4
    $region33: #{_forward.1} parent=1 // pred_fallthru
      _
    // Predicated region
    $region34: #{_forward.1} parent=1 // pred_check
      _
    $region35: #{_forward.1} parent=1 // pred_check_branch
      %48 = sbr.rel (0) target = $region37
    $region36: #{_forward.1} parent=1 // pred_region
      %s50 = ssub.s32 1024, 1024
      %51 = vsyncadd [#allocation6], %s50
      %s52 = sshll.u32 [#allocation5], 4
      %s53 = int_to_ptr.vmem [resolvable:$true] %s52
      %58 = dma.hbm_to_vmem [thread:$0]  %s8, 1024, %s53, [#allocation6], 64, 64, 4
    $region37: #{_forward.1} parent=1 // pred_fallthru
      _
    // Predicated region
    $region38: #{_forward.1} parent=1 // pred_check
      _
    $region39: #{_forward.1} parent=1 // pred_check_branch
      %60 = sbr.rel (0) target = $region41
    $region40: #{_forward.1} parent=1 // pred_region
      _
    $region41: #{_forward.1} parent=1 // pred_fallthru
      _
    // Predicated region
    $region42: #{_forward.1} parent=1 // pred_check
      _
    $region43: #{_forward.1} parent=1 // pred_check_branch
      %62 = sbr.rel (0) target = $region45
    $region44: #{_forward.1} parent=1 // pred_region
      _
    $region45: #{_forward.1} parent=1 // pred_fallthru
      _
    // Predicated region
    $region46: #{_forward.1} parent=1 // pred_check
      _
    $region47: #{_forward.1} parent=1 // pred_check_branch
      %64 = sbr.rel (0) target = $region49
    $region48: #{_forward.1} parent=1 // pred_region
      _
    $region49: #{_forward.1} parent=1 // pred_fallthru
      _
    // Predicated region
    $region50: #{_forward.1} parent=1 // pred_check
      _
    $region51: #{_forward.1} parent=1 // pred_check_branch
      %66 = sbr.rel (0) target = $region53
    $region52: #{_forward.1} parent=1 // pred_region
      %67 = dma.done [#allocation4], 1024
    $region53: #{_forward.1} parent=1 // pred_fallthru
      _
    // Predicated region
    $region54: #{_forward.1} parent=1 // pred_check
      _
    $region55: #{_forward.1} parent=1 // pred_check_branch
      %69 = sbr.rel (0) target = $region57
    $region56: #{_forward.1} parent=1 // pred_region
      %70 = dma.done [#allocation6], 1024
    $region57: #{_forward.1} parent=1 // pred_fallthru
      _
    %v72 = vld [vmem:[%s0] sm:$0xff]
    %v73 = vld [vmem:[%s0 + $0x8] sm:$0xff]
    %v74 = vld [vmem:[%s0 + $0x10] sm:$0xff]
    %v75 = vld [vmem:[%s0 + $0x18] sm:$0xff]
    %v76 = vld [vmem:[%s0 + $0x20] sm:$0xff]
    %v77 = vld [vmem:[%s0 + $0x28] sm:$0xff]
    %v78 = vld [vmem:[%s0 + $0x30] sm:$0xff]
    %v79 = vld [vmem:[%s0 + $0x38] sm:$0xff]
    %v80 = vld [vmem:[%s0 + $0x40] sm:$0xff]
    %v81 = vld [vmem:[%s0 + $0x48] sm:$0xff]
    %v82 = vld [vmem:[%s0 + $0x50] sm:$0xff]
    %v83 = vld [vmem:[%s0 + $0x58] sm:$0xff]
    %v84 = vld [vmem:[%s0 + $0x60] sm:$0xff]
    %v85 = vld [vmem:[%s0 + $0x68] sm:$0xff]
    %v86 = vld [vmem:[%s0 + $0x70] sm:$0xff]
    %v87 = vld [vmem:[%s0 + $0x78] sm:$0xff]
    %v88 = vpack.c.bf16 %v73, %v72
    %v89 = vpack.c.bf16 %v75, %v74
    %v90 = vpack.c.bf16 %v77, %v76
    %v91 = vpack.c.bf16 %v79, %v78
    %v92 = vpack.c.bf16 %v81, %v80
    %v93 = vpack.c.bf16 %v83, %v82
    %v94 = vpack.c.bf16 %v85, %v84
    %v95 = vpack.c.bf16 %v87, %v86
    %v96 = vld [vmem:[%s1] sm:$0xff]
    %v97 = vld [vmem:[%s1 + $0x8] sm:$0xff]
    %v98 = vld [vmem:[%s2] sm:$0x3]
    %v100 = vlaneseq
    %v101 = vshrl.u32 %v100, 7
    %v102 = vsub.s32 0, %v101
    %v103 = vrot.slane %v98, %v102
    %v104 = vlaneseq
    %v105 = vshrl.u32 %v104, 7
    %v106 = vsub.s32 1, %v105
    %v107 = vrot.slane %v98, %v106
    %v112 = vunpack.c.l.b16 %v96
    %v113 = vunpack.c.h.b16 %v96
    %v114 = vunpack.c.l.b16 %v97
    %v115 = vunpack.c.h.b16 %v97
    %v116 = vpack.c.b16 %v114, %v112
    %v117 = vpack.c.b16 %v115, %v113
    %vm120 = vcmask 130048
    %v122 = vsel %vm120, %v88, 0
    %v125 = vsel %vm120, %v89, 0
    %v128 = vsel %vm120, %v90, 0
    %v131 = vsel %vm120, %v91, 0
    %v134 = vsel %vm120, %v92, 0
    %v137 = vsel %vm120, %v93, 0
    %v140 = vsel %vm120, %v94, 0
    %v143 = vsel %vm120, %v95, 0
    %145 = vmatprep.subr.bf16.mxu0 0
    %146 = vmatpush1.bf16.msra.mxu0 0
    %147 = vmatprep.subr.bf16.mxu0 0
    %148 = vmatpush1.bf16.msra.mxu0 0
    %149 = vmatprep.subr.bf16.mxu0 0
    %150 = vmatpush1.bf16.msra.mxu0 0
    %151 = vmatprep.subr.bf16.mxu0 0
    %152 = vmatpush1.bf16.msra.mxu0 0
    %153 = vmatprep.subr.bf16.mxu0 0
    %154 = vmatpush1.bf16.msra.mxu0 0
    %155 = vmatprep.subr.bf16.mxu0 0
    %156 = vmatpush1.bf16.msra.mxu0 0
    %157 = vmatprep.subr.bf16.mxu0 0
    %158 = vmatpush1.bf16.msra.mxu0 0
    %159 = vmatprep.subr.bf16.mxu0 %v117
    %160 = vmatpush1.bf16.msra.mxu0 %v116
    %161 = vmatprep.subr.bf16.mxu0 0
    %162 = vmatpush2.bf16.msra.mxu0 0
    %163 = vmatprep.subr.bf16.mxu0 0
    %164 = vmatpush2.bf16.msra.mxu0 0
    %165 = vmatprep.subr.bf16.mxu0 0
    %166 = vmatpush2.bf16.msra.mxu0 0
    %167 = vmatprep.subr.bf16.mxu0 0
    %168 = vmatpush2.bf16.msra.mxu0 0
    %169 = vmatprep.subr.bf16.mxu0 0
    %170 = vmatpush2.bf16.msra.mxu0 0
    %171 = vmatprep.subr.bf16.mxu0 0
    %172 = vmatpush2.bf16.msra.mxu0 0
    %173 = vmatprep.subr.bf16.mxu0 0
    %174 = vmatpush2.bf16.msra.mxu0 0
    %175 = vmatprep.subr.bf16.mxu0 0
    %176 = vmatpush2.bf16.msra.mxu0 0
    %177 = vmatprep.mubr.bf16.mxu0 0
    %178 = vmatmul.mubr.bf16.gmra.mxu0 %v122
    %v179 = vpop.f32.mrf.mxu0
    %v180 = vadd.f32 %v103, %v179
    %v181 = vpop.f32.mrf.mxu0
    %v182 = vadd.f32 %v107, %v181
    %v183 = vpop.f32.mrf.mxu0
    %v184 = vadd.f32 %v103, %v183
    %v185 = vpop.f32.mrf.mxu0
    %v186 = vadd.f32 %v107, %v185
    %187 = vmatprep.mubr.bf16.mxu0 0
    %188 = vmatmul.mubr.bf16.gmra.mxu0 %v125
    %v189 = vpop.f32.mrf.mxu0
    %v190 = vadd.f32 %v103, %v189
    %v191 = vpop.f32.mrf.mxu0
    %v192 = vadd.f32 %v107, %v191
    %v193 = vpop.f32.mrf.mxu0
    %v194 = vadd.f32 %v103, %v193
    %v195 = vpop.f32.mrf.mxu0
    %v196 = vadd.f32 %v107, %v195
    %197 = vmatprep.mubr.bf16.mxu0 0
    %198 = vmatmul.mubr.bf16.gmra.mxu0 %v128
    %v199 = vpop.f32.mrf.mxu0
    %v200 = vadd.f32 %v103, %v199
    %v201 = vpop.f32.mrf.mxu0
    %v202 = vadd.f32 %v107, %v201
    %v203 = vpop.f32.mrf.mxu0
    %v204 = vadd.f32 %v103, %v203
    %v205 = vpop.f32.mrf.mxu0
    %v206 = vadd.f32 %v107, %v205
    %207 = vmatprep.mubr.bf16.mxu0 0
    %208 = vmatmul.mubr.bf16.gmra.mxu0 %v131
    %v209 = vpop.f32.mrf.mxu0
    %v210 = vadd.f32 %v103, %v209
    %v211 = vpop.f32.mrf.mxu0
    %v212 = vadd.f32 %v107, %v211
    %v213 = vpop.f32.mrf.mxu0
    %v214 = vadd.f32 %v103, %v213
    %v215 = vpop.f32.mrf.mxu0
    %v216 = vadd.f32 %v107, %v215
    %217 = vmatprep.mubr.bf16.mxu0 0
    %218 = vmatmul.mubr.bf16.gmra.mxu0 %v134
    %v219 = vpop.f32.mrf.mxu0
    %v220 = vadd.f32 %v103, %v219
    %v221 = vpop.f32.mrf.mxu0
    %v222 = vadd.f32 %v107, %v221
    %v223 = vpop.f32.mrf.mxu0
    %v224 = vadd.f32 %v103, %v223
    %v225 = vpop.f32.mrf.mxu0
    %v226 = vadd.f32 %v107, %v225
    %227 = vmatprep.mubr.bf16.mxu0 0
    %228 = vmatmul.mubr.bf16.gmra.mxu0 %v137
    %v229 = vpop.f32.mrf.mxu0
    %v230 = vadd.f32 %v103, %v229
    %v231 = vpop.f32.mrf.mxu0
    %v232 = vadd.f32 %v107, %v231
    %v233 = vpop.f32.mrf.mxu0
    %v234 = vadd.f32 %v103, %v233
    %v235 = vpop.f32.mrf.mxu0
    %v236 = vadd.f32 %v107, %v235
    %237 = vmatprep.mubr.bf16.mxu0 0
    %238 = vmatmul.mubr.bf16.gmra.mxu0 %v140
    %v239 = vpop.f32.mrf.mxu0
    %v240 = vadd.f32 %v103, %v239
    %v241 = vpop.f32.mrf.mxu0
    %v242 = vadd.f32 %v107, %v241
    %v243 = vpop.f32.mrf.mxu0
    %v244 = vadd.f32 %v103, %v243
    %v245 = vpop.f32.mrf.mxu0
    %v246 = vadd.f32 %v107, %v245
    %247 = vmatprep.mubr.bf16.mxu0 0
    %248 = vmatmul.mubr.bf16.gmra.mxu0 %v143
    %v249 = vpop.f32.mrf.mxu0
    %v250 = vadd.f32 %v103, %v249
    %v251 = vpop.f32.mrf.mxu0
    %v252 = vadd.f32 %v107, %v251
    %v253 = vpop.f32.mrf.mxu0
    %v254 = vadd.f32 %v103, %v253
    %v255 = vpop.f32.mrf.mxu0
    %v256 = vadd.f32 %v107, %v255
    %257 = vdwg.mxu0
    %v258 = vmax.f32 %v180, 0.0
    %v259 = vmax.f32 %v184, 0.0
    %v260 = vmax.f32 %v190, 0.0
    %v261 = vmax.f32 %v194, 0.0
    %v262 = vmax.f32 %v200, 0.0
    %v263 = vmax.f32 %v204, 0.0
    %v264 = vmax.f32 %v210, 0.0
    %v265 = vmax.f32 %v214, 0.0
    %v266 = vmax.f32 %v220, 0.0
    %v267 = vmax.f32 %v224, 0.0
    %v268 = vmax.f32 %v230, 0.0
    %v269 = vmax.f32 %v234, 0.0
    %v270 = vmax.f32 %v240, 0.0
    %v271 = vmax.f32 %v244, 0.0
    %v272 = vmax.f32 %v250, 0.0
    %v273 = vmax.f32 %v254, 0.0
    %v274 = vpack.c.bf16 %v259, %v258
    %v275 = vpack.c.bf16 %v261, %v260
    %v276 = vpack.c.bf16 %v263, %v262
    %v277 = vpack.c.bf16 %v265, %v264
    %v278 = vpack.c.bf16 %v267, %v266
    %v279 = vpack.c.bf16 %v269, %v268
    %v280 = vpack.c.bf16 %v271, %v270
    %v281 = vpack.c.bf16 %v273, %v272
    %v282 = vld [vmem:[%s3] sm:$0xf]
    %v283 = vld [vmem:[%s3 + $0x4] sm:$0xf]
    %v284 = vld [vmem:[%s3 + $0x8] sm:$0xf]
    %v285 = vld [vmem:[%s3 + $0xc] sm:$0xf]
    %v286 = vld [vmem:[%s3 + $0x10] sm:$0xf]
    %v287 = vld [vmem:[%s3 + $0x14] sm:$0xf]
    %v288 = vld [vmem:[%s3 + $0x18] sm:$0xf]
    %v289 = vld [vmem:[%s3 + $0x1c] sm:$0xf]
    %v290 = vld [vmem:[%s3 + $0x20] sm:$0xf]
    %v291 = vld [vmem:[%s3 + $0x24] sm:$0xf]
    %v292 = vld [vmem:[%s3 + $0x28] sm:$0xf]
    %v293 = vld [vmem:[%s3 + $0x2c] sm:$0xf]
    %v294 = vld [vmem:[%s3 + $0x30] sm:$0xf]
    %v295 = vld [vmem:[%s3 + $0x34] sm:$0xf]
    %v296 = vld [vmem:[%s3 + $0x38] sm:$0xf]
    %v297 = vld [vmem:[%s3 + $0x3c] sm:$0xf]
    %v298 = vld [vmem:[%s4] sm:$0x1]
    %v300 = vlaneseq
    %v301 = vshrl.u32 %v300, 7
    %v302 = vsub.s32 0, %v301
    %v303 = vrot.slane %v298, %v302
    %v321 = vunpack.c.l.b16 %v282
    %v322 = vunpack.c.l.b16 %v283
    %v323 = vunpack.c.l.b16 %v284
    %v324 = vunpack.c.l.b16 %v285
    %v325 = vunpack.c.l.b16 %v286
    %v326 = vunpack.c.l.b16 %v287
    %v327 = vunpack.c.l.b16 %v288
    %v328 = vunpack.c.l.b16 %v289
    %v329 = vunpack.c.l.b16 %v290
    %v330 = vunpack.c.l.b16 %v291
    %v331 = vunpack.c.l.b16 %v292
    %v332 = vunpack.c.l.b16 %v293
    %v333 = vunpack.c.l.b16 %v294
    %v334 = vunpack.c.l.b16 %v295
    %v335 = vunpack.c.l.b16 %v296
    %v336 = vunpack.c.l.b16 %v297
    %v337 = vpack.c.b16 %v322, %v321
    %v338 = vpack.c.b16 %v324, %v323
    %v339 = vpack.c.b16 %v326, %v325
    %v340 = vpack.c.b16 %v328, %v327
    %v341 = vpack.c.b16 %v330, %v329
    %v342 = vpack.c.b16 %v332, %v331
    %v343 = vpack.c.b16 %v334, %v333
    %v344 = vpack.c.b16 %v336, %v335
    %353 = vmatprep.subr.bf16.mxu0 0
    %354 = vmatpush1.bf16.msra.mxu0 %v344
    %355 = vmatprep.subr.bf16.mxu0 0
    %356 = vmatpush1.bf16.msra.mxu0 %v343
    %357 = vmatprep.subr.bf16.mxu0 0
    %358 = vmatpush1.bf16.msra.mxu0 %v342
    %359 = vmatprep.subr.bf16.mxu0 0
    %360 = vmatpush1.bf16.msra.mxu0 %v341
    %361 = vmatprep.subr.bf16.mxu0 0
    %362 = vmatpush1.bf16.msra.mxu0 %v340
    %363 = vmatprep.subr.bf16.mxu0 0
    %364 = vmatpush1.bf16.msra.mxu0 %v339
    %365 = vmatprep.subr.bf16.mxu0 0
    %366 = vmatpush1.bf16.msra.mxu0 %v338
    %367 = vmatprep.subr.bf16.mxu0 0
    %368 = vmatpush1.bf16.msra.mxu0 %v337
    %369 = vmatprep.subr.bf16.mxu0 0
    %370 = vmatpush2.bf16.msra.mxu0 0
    %371 = vmatprep.subr.bf16.mxu0 0
    %372 = vmatpush2.bf16.msra.mxu0 0
    %373 = vmatprep.subr.bf16.mxu0 0
    %374 = vmatpush2.bf16.msra.mxu0 0
    %375 = vmatprep.subr.bf16.mxu0 0
    %376 = vmatpush2.bf16.msra.mxu0 0
    %377 = vmatprep.subr.bf16.mxu0 0
    %378 = vmatpush2.bf16.msra.mxu0 0
    %379 = vmatprep.subr.bf16.mxu0 0
    %380 = vmatpush2.bf16.msra.mxu0 0
    %381 = vmatprep.subr.bf16.mxu0 0
    %382 = vmatpush2.bf16.msra.mxu0 0
    %383 = vmatprep.subr.bf16.mxu0 0
    %384 = vmatpush2.bf16.msra.mxu0 0
    %385 = vmatprep.mubr.bf16.mxu0 0
    %386 = vmatmul.mubr.bf16.gmra.mxu0 %v274
    %v387 = vpop.f32.mrf.mxu0
    %v388 = vadd.f32 %v303, %v387
    %v389 = vpop.f32.mrf.mxu0
    %v390 = vpop.f32.mrf.mxu0
    %v391 = vadd.f32 %v303, %v390
    %v392 = vpop.f32.mrf.mxu0
    %393 = vmatprep.mubr.bf16.mxu0 0
    %394 = vmatmul.mubr.bf16.gmra.mxu0 %v275
    %v395 = vpop.f32.mrf.mxu0
    %v396 = vadd.f32 %v303, %v395
    %v397 = vpop.f32.mrf.mxu0
    %v398 = vpop.f32.mrf.mxu0
    %v399 = vadd.f32 %v303, %v398
    %v400 = vpop.f32.mrf.mxu0
    %401 = vmatprep.mubr.bf16.mxu0 0
    %402 = vmatmul.mubr.bf16.gmra.mxu0 %v276
    %v403 = vpop.f32.mrf.mxu0
    %v404 = vadd.f32 %v303, %v403
    %v405 = vpop.f32.mrf.mxu0
    %v406 = vpop.f32.mrf.mxu0
    %v407 = vadd.f32 %v303, %v406
    %v408 = vpop.f32.mrf.mxu0
    %409 = vmatprep.mubr.bf16.mxu0 0
    %410 = vmatmul.mubr.bf16.gmra.mxu0 %v277
    %v411 = vpop.f32.mrf.mxu0
    %v412 = vadd.f32 %v303, %v411
    %v413 = vpop.f32.mrf.mxu0
    %v414 = vpop.f32.mrf.mxu0
    %v415 = vadd.f32 %v303, %v414
    %v416 = vpop.f32.mrf.mxu0
    %417 = vmatprep.mubr.bf16.mxu0 0
    %418 = vmatmul.mubr.bf16.gmra.mxu0 %v278
    %v419 = vpop.f32.mrf.mxu0
    %v420 = vadd.f32 %v303, %v419
    %v421 = vpop.f32.mrf.mxu0
    %v422 = vpop.f32.mrf.mxu0
    %v423 = vadd.f32 %v303, %v422
    %v424 = vpop.f32.mrf.mxu0
    %425 = vmatprep.mubr.bf16.mxu0 0
    %426 = vmatmul.mubr.bf16.gmra.mxu0 %v279
    %v427 = vpop.f32.mrf.mxu0
    %v428 = vadd.f32 %v303, %v427
    %v429 = vpop.f32.mrf.mxu0
    %v430 = vpop.f32.mrf.mxu0
    %v431 = vadd.f32 %v303, %v430
    %v432 = vpop.f32.mrf.mxu0
    %433 = vmatprep.mubr.bf16.mxu0 0
    %434 = vmatmul.mubr.bf16.gmra.mxu0 %v280
    %v435 = vpop.f32.mrf.mxu0
    %v436 = vadd.f32 %v303, %v435
    %v437 = vpop.f32.mrf.mxu0
    %v438 = vpop.f32.mrf.mxu0
    %v439 = vadd.f32 %v303, %v438
    %v440 = vpop.f32.mrf.mxu0
    %441 = vmatprep.mubr.bf16.mxu0 0
    %442 = vmatmul.mubr.bf16.gmra.mxu0 %v281
    %v443 = vpop.f32.mrf.mxu0
    %v444 = vadd.f32 %v303, %v443
    %v445 = vpop.f32.mrf.mxu0
    %v446 = vpop.f32.mrf.mxu0
    %v447 = vadd.f32 %v303, %v446
    %v448 = vpop.f32.mrf.mxu0
    %449 = vdwg.mxu0
    %v450 = vmax.f32 %v388, 0.0
    %v451 = vmax.f32 %v391, 0.0
    %v452 = vmax.f32 %v396, 0.0
    %v453 = vmax.f32 %v399, 0.0
    %v454 = vmax.f32 %v404, 0.0
    %v455 = vmax.f32 %v407, 0.0
    %v456 = vmax.f32 %v412, 0.0
    %v457 = vmax.f32 %v415, 0.0
    %v458 = vmax.f32 %v420, 0.0
    %v459 = vmax.f32 %v423, 0.0
    %v460 = vmax.f32 %v428, 0.0
    %v461 = vmax.f32 %v431, 0.0
    %v462 = vmax.f32 %v436, 0.0
    %v463 = vmax.f32 %v439, 0.0
    %v464 = vmax.f32 %v444, 0.0
    %v465 = vmax.f32 %v447, 0.0
    %v466 = vpack.c.bf16 %v451, %v450
    %v467 = vpack.c.bf16 %v453, %v452
    %v468 = vpack.c.bf16 %v455, %v454
    %v469 = vpack.c.bf16 %v457, %v456
    %v470 = vpack.c.bf16 %v459, %v458
    %v471 = vpack.c.bf16 %v461, %v460
    %v472 = vpack.c.bf16 %v463, %v462
    %v473 = vpack.c.bf16 %v465, %v464
    %v474 = vld [vmem:[%s5] sm:$0xf]
    %v475 = vld [vmem:[%s5 + $0x4] sm:$0xf]
    %v476 = vld [vmem:[%s5 + $0x8] sm:$0xf]
    %v477 = vld [vmem:[%s5 + $0xc] sm:$0xf]
    %v478 = vld [vmem:[%s5 + $0x10] sm:$0xf]
    %v479 = vld [vmem:[%s5 + $0x14] sm:$0xf]
    %v480 = vld [vmem:[%s5 + $0x18] sm:$0xf]
    %v481 = vld [vmem:[%s5 + $0x1c] sm:$0xf]
    %v482 = vld [vmem:[%s5 + $0x20] sm:$0xf]
    %v483 = vld [vmem:[%s5 + $0x24] sm:$0xf]
    %v484 = vld [vmem:[%s5 + $0x28] sm:$0xf]
    %v485 = vld [vmem:[%s5 + $0x2c] sm:$0xf]
    %v486 = vld [vmem:[%s5 + $0x30] sm:$0xf]
    %v487 = vld [vmem:[%s5 + $0x34] sm:$0xf]
    %v488 = vld [vmem:[%s5 + $0x38] sm:$0xf]
    %v489 = vld [vmem:[%s5 + $0x3c] sm:$0xf]
    %v490 = vld [vmem:[%s6] sm:$0x1]
    %v492 = vlaneseq
    %v493 = vshrl.u32 %v492, 7
    %v494 = vsub.s32 0, %v493
    %v495 = vrot.slane %v490, %v494
    %v513 = vunpack.c.l.b16 %v474
    %v514 = vunpack.c.l.b16 %v475
    %v515 = vunpack.c.l.b16 %v476
    %v516 = vunpack.c.l.b16 %v477
    %v517 = vunpack.c.l.b16 %v478
    %v518 = vunpack.c.l.b16 %v479
    %v519 = vunpack.c.l.b16 %v480
    %v520 = vunpack.c.l.b16 %v481
    %v521 = vunpack.c.l.b16 %v482
    %v522 = vunpack.c.l.b16 %v483
    %v523 = vunpack.c.l.b16 %v484
    %v524 = vunpack.c.l.b16 %v485
    %v525 = vunpack.c.l.b16 %v486
    %v526 = vunpack.c.l.b16 %v487
    %v527 = vunpack.c.l.b16 %v488
    %v528 = vunpack.c.l.b16 %v489
    %v529 = vpack.c.b16 %v514, %v513
    %v530 = vpack.c.b16 %v516, %v515
    %v531 = vpack.c.b16 %v518, %v517
    %v532 = vpack.c.b16 %v520, %v519
    %v533 = vpack.c.b16 %v522, %v521
    %v534 = vpack.c.b16 %v524, %v523
    %v535 = vpack.c.b16 %v526, %v525
    %v536 = vpack.c.b16 %v528, %v527
    %545 = vmatprep.subr.bf16.mxu0 0
    %546 = vmatpush1.bf16.msra.mxu0 %v536
    %547 = vmatprep.subr.bf16.mxu0 0
    %548 = vmatpush1.bf16.msra.mxu0 %v535
    %549 = vmatprep.subr.bf16.mxu0 0
    %550 = vmatpush1.bf16.msra.mxu0 %v534
    %551 = vmatprep.subr.bf16.mxu0 0
    %552 = vmatpush1.bf16.msra.mxu0 %v533
    %553 = vmatprep.subr.bf16.mxu0 0
    %554 = vmatpush1.bf16.msra.mxu0 %v532
    %555 = vmatprep.subr.bf16.mxu0 0
    %556 = vmatpush1.bf16.msra.mxu0 %v531
    %557 = vmatprep.subr.bf16.mxu0 0
    %558 = vmatpush1.bf16.msra.mxu0 %v530
    %559 = vmatprep.subr.bf16.mxu0 0
    %560 = vmatpush1.bf16.msra.mxu0 %v529
    %561 = vmatprep.subr.bf16.mxu0 0
    %562 = vmatpush2.bf16.msra.mxu0 0
    %563 = vmatprep.subr.bf16.mxu0 0
    %564 = vmatpush2.bf16.msra.mxu0 0
    %565 = vmatprep.subr.bf16.mxu0 0
    %566 = vmatpush2.bf16.msra.mxu0 0
    %567 = vmatprep.subr.bf16.mxu0 0
    %568 = vmatpush2.bf16.msra.mxu0 0
    %569 = vmatprep.subr.bf16.mxu0 0
    %570 = vmatpush2.bf16.msra.mxu0 0
    %571 = vmatprep.subr.bf16.mxu0 0
    %572 = vmatpush2.bf16.msra.mxu0 0
    %573 = vmatprep.subr.bf16.mxu0 0
    %574 = vmatpush2.bf16.msra.mxu0 0
    %575 = vmatprep.subr.bf16.mxu0 0
    %576 = vmatpush2.bf16.msra.mxu0 0
    %577 = vmatprep.mubr.bf16.mxu0 0
    %578 = vmatmul.mubr.bf16.gmra.mxu0 %v466
    %v579 = vpop.f32.mrf.mxu0
    %v580 = vadd.f32 %v495, %v579
    %v581 = vpop.f32.mrf.mxu0
    %v582 = vpop.f32.mrf.mxu0
    %v583 = vadd.f32 %v495, %v582
    %v584 = vpop.f32.mrf.mxu0
    %585 = vmatprep.mubr.bf16.mxu0 0
    %586 = vmatmul.mubr.bf16.gmra.mxu0 %v467
    %v587 = vpop.f32.mrf.mxu0
    %v588 = vadd.f32 %v495, %v587
    %v589 = vpop.f32.mrf.mxu0
    %v590 = vpop.f32.mrf.mxu0
    %v591 = vadd.f32 %v495, %v590
    %v592 = vpop.f32.mrf.mxu0
    %593 = vmatprep.mubr.bf16.mxu0 0
    %594 = vmatmul.mubr.bf16.gmra.mxu0 %v468
    %v595 = vpop.f32.mrf.mxu0
    %v596 = vadd.f32 %v495, %v595
    %v597 = vpop.f32.mrf.mxu0
    %v598 = vpop.f32.mrf.mxu0
    %v599 = vadd.f32 %v495, %v598
    %v600 = vpop.f32.mrf.mxu0
    %601 = vmatprep.mubr.bf16.mxu0 0
    %602 = vmatmul.mubr.bf16.gmra.mxu0 %v469
    %v603 = vpop.f32.mrf.mxu0
    %v604 = vadd.f32 %v495, %v603
    %v605 = vpop.f32.mrf.mxu0
    %v606 = vpop.f32.mrf.mxu0
    %v607 = vadd.f32 %v495, %v606
    %v608 = vpop.f32.mrf.mxu0
    %609 = vmatprep.mubr.bf16.mxu0 0
    %610 = vmatmul.mubr.bf16.gmra.mxu0 %v470
    %v611 = vpop.f32.mrf.mxu0
    %v612 = vadd.f32 %v495, %v611
    %v613 = vpop.f32.mrf.mxu0
    %v614 = vpop.f32.mrf.mxu0
    %v615 = vadd.f32 %v495, %v614
    %v616 = vpop.f32.mrf.mxu0
    %617 = vmatprep.mubr.bf16.mxu0 0
    %618 = vmatmul.mubr.bf16.gmra.mxu0 %v471
    %v619 = vpop.f32.mrf.mxu0
    %v620 = vadd.f32 %v495, %v619
    %v621 = vpop.f32.mrf.mxu0
    %v622 = vpop.f32.mrf.mxu0
    %v623 = vadd.f32 %v495, %v622
    %v624 = vpop.f32.mrf.mxu0
    %625 = vmatprep.mubr.bf16.mxu0 0
    %626 = vmatmul.mubr.bf16.gmra.mxu0 %v472
    %v627 = vpop.f32.mrf.mxu0
    %v628 = vadd.f32 %v495, %v627
    %v629 = vpop.f32.mrf.mxu0
    %v630 = vpop.f32.mrf.mxu0
    %v631 = vadd.f32 %v495, %v630
    %v632 = vpop.f32.mrf.mxu0
    %633 = vmatprep.mubr.bf16.mxu0 0
    %634 = vmatmul.mubr.bf16.gmra.mxu0 %v473
    %v635 = vpop.f32.mrf.mxu0
    %v636 = vadd.f32 %v495, %v635
    %v637 = vpop.f32.mrf.mxu0
    %v638 = vpop.f32.mrf.mxu0
    %v639 = vadd.f32 %v495, %v638
    %v640 = vpop.f32.mrf.mxu0
    %641 = vdwg.mxu0
    %v642 = vtanh.pop %v580
    %v643 = vtanh.pop %v583
    %v644 = vtanh.pop %v588
    %v645 = vtanh.pop %v591
    %v646 = vtanh.pop %v596
    %v647 = vtanh.pop %v599
    %v648 = vtanh.pop %v604
    %v649 = vtanh.pop %v607
    %v650 = vtanh.pop %v612
    %v651 = vtanh.pop %v615
    %v652 = vtanh.pop %v620
    %v653 = vtanh.pop %v623
    %v654 = vtanh.pop %v628
    %v655 = vtanh.pop %v631
    %v656 = vtanh.pop %v636
    %v657 = vtanh.pop %v639
    %v658 = vpack.c.bf16 %v643, %v642
    %v659 = vpack.c.bf16 %v645, %v644
    %v660 = vpack.c.bf16 %v647, %v646
    %v661 = vpack.c.bf16 %v649, %v648
    %v662 = vpack.c.bf16 %v651, %v650
    %v663 = vpack.c.bf16 %v653, %v652
    %v664 = vpack.c.bf16 %v655, %v654
    %v665 = vpack.c.bf16 %v657, %v656
    %v666 = vld [vmem:[#allocation3] sm:$0xf]
    %v667 = vld [vmem:[#allocation3 + $0x4] sm:$0xf]
    %v668 = vld [vmem:[#allocation3 + $0x8] sm:$0xf]
    %v669 = vld [vmem:[#allocation3 + $0xc] sm:$0xf]
    %v670 = vld [vmem:[#allocation3 + $0x10] sm:$0xf]
    %v671 = vld [vmem:[#allocation3 + $0x14] sm:$0xf]
    %v672 = vld [vmem:[#allocation3 + $0x18] sm:$0xf]
    %v673 = vld [vmem:[#allocation3 + $0x1c] sm:$0xf]
    %v674 = vld [vmem:[#allocation3 + $0x20] sm:$0xf]
    %v675 = vld [vmem:[#allocation3 + $0x24] sm:$0xf]
    %v676 = vld [vmem:[#allocation3 + $0x28] sm:$0xf]
    %v677 = vld [vmem:[#allocation3 + $0x2c] sm:$0xf]
    %v678 = vld [vmem:[#allocation3 + $0x30] sm:$0xf]
    %v679 = vld [vmem:[#allocation3 + $0x34] sm:$0xf]
    %v680 = vld [vmem:[#allocation3 + $0x38] sm:$0xf]
    %v681 = vld [vmem:[#allocation3 + $0x3c] sm:$0xf]
    %v698 = vunpack.c.l.b16 %v666
    %v699 = vunpack.c.l.b16 %v667
    %v700 = vunpack.c.l.b16 %v668
    %v701 = vunpack.c.l.b16 %v669
    %v702 = vunpack.c.l.b16 %v670
    %v703 = vunpack.c.l.b16 %v671
    %v704 = vunpack.c.l.b16 %v672
    %v705 = vunpack.c.l.b16 %v673
    %v706 = vunpack.c.l.b16 %v674
    %v707 = vunpack.c.l.b16 %v675
    %v708 = vunpack.c.l.b16 %v676
    %v709 = vunpack.c.l.b16 %v677
    %v710 = vunpack.c.l.b16 %v678
    %v711 = vunpack.c.l.b16 %v679
    %v712 = vunpack.c.l.b16 %v680
    %v713 = vunpack.c.l.b16 %v681
    %v714 = vpack.c.b16 %v699, %v698
    %v715 = vpack.c.b16 %v701, %v700
    %v716 = vpack.c.b16 %v703, %v702
    %v717 = vpack.c.b16 %v705, %v704
    %v718 = vpack.c.b16 %v707, %v706
    %v719 = vpack.c.b16 %v709, %v708
    %v720 = vpack.c.b16 %v711, %v710
    %v721 = vpack.c.b16 %v713, %v712
    %730 = vmatprep.subr.bf16.mxu0 0
    %731 = vmatpush1.bf16.msra.mxu0 %v721
    %732 = vmatprep.subr.bf16.mxu0 0
    %733 = vmatpush1.bf16.msra.mxu0 %v720
    %734 = vmatprep.subr.bf16.mxu0 0
    %735 = vmatpush1.bf16.msra.mxu0 %v719
    %736 = vmatprep.subr.bf16.mxu0 0
    %737 = vmatpush1.bf16.msra.mxu0 %v718
    %738 = vmatprep.subr.bf16.mxu0 0
    %739 = vmatpush1.bf16.msra.mxu0 %v717
    %740 = vmatprep.subr.bf16.mxu0 0
    %741 = vmatpush1.bf16.msra.mxu0 %v716
    %742 = vmatprep.subr.bf16.mxu0 0
    %743 = vmatpush1.bf16.msra.mxu0 %v715
    %744 = vmatprep.subr.bf16.mxu0 0
    %745 = vmatpush1.bf16.msra.mxu0 %v714
    %746 = vmatprep.subr.bf16.mxu0 0
    %747 = vmatpush2.bf16.msra.mxu0 0
    %748 = vmatprep.subr.bf16.mxu0 0
    %749 = vmatpush2.bf16.msra.mxu0 0
    %750 = vmatprep.subr.bf16.mxu0 0
    %751 = vmatpush2.bf16.msra.mxu0 0
    %752 = vmatprep.subr.bf16.mxu0 0
    %753 = vmatpush2.bf16.msra.mxu0 0
    %754 = vmatprep.subr.bf16.mxu0 0
    %755 = vmatpush2.bf16.msra.mxu0 0
    %756 = vmatprep.subr.bf16.mxu0 0
    %757 = vmatpush2.bf16.msra.mxu0 0
    %758 = vmatprep.subr.bf16.mxu0 0
    %759 = vmatpush2.bf16.msra.mxu0 0
    %760 = vmatprep.subr.bf16.mxu0 0
    %761 = vmatpush2.bf16.msra.mxu0 0
    %762 = vmatprep.mubr.bf16.mxu0 0
    %763 = vmatmul.mubr.bf16.gmra.mxu0 %v658
    %v764 = vpop.f32.mrf.mxu0
    %v765 = vadd.f32 0.0, %v764
    %v766 = vpop.f32.mrf.mxu0
    %v767 = vpop.f32.mrf.mxu0
    %v768 = vadd.f32 0.0, %v767
    %v769 = vpop.f32.mrf.mxu0
    %770 = vmatprep.mubr.bf16.mxu0 0
    %771 = vmatmul.mubr.bf16.gmra.mxu0 %v659
    %v772 = vpop.f32.mrf.mxu0
    %v773 = vadd.f32 0.0, %v772
    %v774 = vpop.f32.mrf.mxu0
    %v775 = vpop.f32.mrf.mxu0
    %v776 = vadd.f32 0.0, %v775
    %v777 = vpop.f32.mrf.mxu0
    %778 = vmatprep.mubr.bf16.mxu0 0
    %779 = vmatmul.mubr.bf16.gmra.mxu0 %v660
    %v780 = vpop.f32.mrf.mxu0
    %v781 = vadd.f32 0.0, %v780
    %v782 = vpop.f32.mrf.mxu0
    %v783 = vpop.f32.mrf.mxu0
    %v784 = vadd.f32 0.0, %v783
    %v785 = vpop.f32.mrf.mxu0
    %786 = vmatprep.mubr.bf16.mxu0 0
    %787 = vmatmul.mubr.bf16.gmra.mxu0 %v661
    %v788 = vpop.f32.mrf.mxu0
    %v789 = vadd.f32 0.0, %v788
    %v790 = vpop.f32.mrf.mxu0
    %v791 = vpop.f32.mrf.mxu0
    %v792 = vadd.f32 0.0, %v791
    %v793 = vpop.f32.mrf.mxu0
    %794 = vmatprep.mubr.bf16.mxu0 0
    %795 = vmatmul.mubr.bf16.gmra.mxu0 %v662
    %v796 = vpop.f32.mrf.mxu0
    %v797 = vadd.f32 0.0, %v796
    %v798 = vpop.f32.mrf.mxu0
    %v799 = vpop.f32.mrf.mxu0
    %v800 = vadd.f32 0.0, %v799
    %v801 = vpop.f32.mrf.mxu0
    %802 = vmatprep.mubr.bf16.mxu0 0
    %803 = vmatmul.mubr.bf16.gmra.mxu0 %v663
    %v804 = vpop.f32.mrf.mxu0
    %v805 = vadd.f32 0.0, %v804
    %v806 = vpop.f32.mrf.mxu0
    %v807 = vpop.f32.mrf.mxu0
    %v808 = vadd.f32 0.0, %v807
    %v809 = vpop.f32.mrf.mxu0
    %810 = vmatprep.mubr.bf16.mxu0 0
    %811 = vmatmul.mubr.bf16.gmra.mxu0 %v664
    %v812 = vpop.f32.mrf.mxu0
    %v813 = vadd.f32 0.0, %v812
    %v814 = vpop.f32.mrf.mxu0
    %v815 = vpop.f32.mrf.mxu0
    %v816 = vadd.f32 0.0, %v815
    %v817 = vpop.f32.mrf.mxu0
    %818 = vmatprep.mubr.bf16.mxu0 0
    %819 = vmatmul.mubr.bf16.gmra.mxu0 %v665
    %v820 = vpop.f32.mrf.mxu0
    %v821 = vadd.f32 0.0, %v820
    %v822 = vpop.f32.mrf.mxu0
    %v823 = vpop.f32.mrf.mxu0
    %v824 = vadd.f32 0.0, %v823
    %v825 = vpop.f32.mrf.mxu0
    %826 = vdwg.mxu0
    %v827 = vadd.f32 %v182, %v765
    %v828 = vadd.f32 %v186, %v768
    %v829 = vadd.f32 %v192, %v773
    %v830 = vadd.f32 %v196, %v776
    %v831 = vadd.f32 %v202, %v781
    %v832 = vadd.f32 %v206, %v784
    %v833 = vadd.f32 %v212, %v789
    %v834 = vadd.f32 %v216, %v792
    %v835 = vadd.f32 %v222, %v797
    %v836 = vadd.f32 %v226, %v800
    %v837 = vadd.f32 %v232, %v805
    %v838 = vadd.f32 %v236, %v808
    %v839 = vadd.f32 %v242, %v813
    %v840 = vadd.f32 %v246, %v816
    %v841 = vadd.f32 %v252, %v821
    %v842 = vadd.f32 %v256, %v824
    %v843 = vmax.f32 %v827, 0.0
    %v844 = vmax.f32 %v828, 0.0
    %v845 = vmax.f32 %v829, 0.0
    %v846 = vmax.f32 %v830, 0.0
    %v847 = vmax.f32 %v831, 0.0
    %v848 = vmax.f32 %v832, 0.0
    %v849 = vmax.f32 %v833, 0.0
    %v850 = vmax.f32 %v834, 0.0
    %v851 = vmax.f32 %v835, 0.0
    %v852 = vmax.f32 %v836, 0.0
    %v853 = vmax.f32 %v837, 0.0
    %v854 = vmax.f32 %v838, 0.0
    %v855 = vmax.f32 %v839, 0.0
    %v856 = vmax.f32 %v840, 0.0
    %v857 = vmax.f32 %v841, 0.0
    %v858 = vmax.f32 %v842, 0.0
    %v859 = vpack.c.bf16 %v844, %v843
    %v860 = vpack.c.bf16 %v846, %v845
    %v861 = vpack.c.bf16 %v848, %v847
    %v862 = vpack.c.bf16 %v850, %v849
    %v863 = vpack.c.bf16 %v852, %v851
    %v864 = vpack.c.bf16 %v854, %v853
    %v865 = vpack.c.bf16 %v856, %v855
    %v866 = vpack.c.bf16 %v858, %v857
    %v867 = vld [vmem:[#allocation5] sm:$0xf]
    %v868 = vld [vmem:[#allocation5 + $0x4] sm:$0xf]
    %v869 = vld [vmem:[#allocation5 + $0x8] sm:$0xf]
    %v870 = vld [vmem:[#allocation5 + $0xc] sm:$0xf]
    %v871 = vld [vmem:[#allocation5 + $0x10] sm:$0xf]
    %v872 = vld [vmem:[#allocation5 + $0x14] sm:$0xf]
    %v873 = vld [vmem:[#allocation5 + $0x18] sm:$0xf]
    %v874 = vld [vmem:[#allocation5 + $0x1c] sm:$0xf]
    %v875 = vld [vmem:[#allocation5 + $0x20] sm:$0xf]
    %v876 = vld [vmem:[#allocation5 + $0x24] sm:$0xf]
    %v877 = vld [vmem:[#allocation5 + $0x28] sm:$0xf]
    %v878 = vld [vmem:[#allocation5 + $0x2c] sm:$0xf]
    %v879 = vld [vmem:[#allocation5 + $0x30] sm:$0xf]
    %v880 = vld [vmem:[#allocation5 + $0x34] sm:$0xf]
    %v881 = vld [vmem:[#allocation5 + $0x38] sm:$0xf]
    %v882 = vld [vmem:[#allocation5 + $0x3c] sm:$0xf]
    %v883 = vld [vmem:[%s9] sm:$0x1]
    %v885 = vlaneseq
    %v886 = vshrl.u32 %v885, 7
    %v887 = vsub.s32 0, %v886
    %v888 = vrot.slane %v883, %v887
    %v906 = vunpack.c.l.b16 %v867
    %v907 = vunpack.c.l.b16 %v868
    %v908 = vunpack.c.l.b16 %v869
    %v909 = vunpack.c.l.b16 %v870
    %v910 = vunpack.c.l.b16 %v871
    %v911 = vunpack.c.l.b16 %v872
    %v912 = vunpack.c.l.b16 %v873
    %v913 = vunpack.c.l.b16 %v874
    %v914 = vunpack.c.l.b16 %v875
    %v915 = vunpack.c.l.b16 %v876
    %v916 = vunpack.c.l.b16 %v877
    %v917 = vunpack.c.l.b16 %v878
    %v918 = vunpack.c.l.b16 %v879
    %v919 = vunpack.c.l.b16 %v880
    %v920 = vunpack.c.l.b16 %v881
    %v921 = vunpack.c.l.b16 %v882
    %v922 = vpack.c.b16 %v907, %v906
    %v923 = vpack.c.b16 %v909, %v908
    %v924 = vpack.c.b16 %v911, %v910
    %v925 = vpack.c.b16 %v913, %v912
    %v926 = vpack.c.b16 %v915, %v914
    %v927 = vpack.c.b16 %v917, %v916
    %v928 = vpack.c.b16 %v919, %v918
    %v929 = vpack.c.b16 %v921, %v920
    %938 = vmatprep.subr.bf16.mxu0 0
    %939 = vmatpush1.bf16.msra.mxu0 %v929
    %940 = vmatprep.subr.bf16.mxu0 0
    %941 = vmatpush1.bf16.msra.mxu0 %v928
    %942 = vmatprep.subr.bf16.mxu0 0
    %943 = vmatpush1.bf16.msra.mxu0 %v927
    %944 = vmatprep.subr.bf16.mxu0 0
    %945 = vmatpush1.bf16.msra.mxu0 %v926
    %946 = vmatprep.subr.bf16.mxu0 0
    %947 = vmatpush1.bf16.msra.mxu0 %v925
    %948 = vmatprep.subr.bf16.mxu0 0
    %949 = vmatpush1.bf16.msra.mxu0 %v924
    %950 = vmatprep.subr.bf16.mxu0 0
    %951 = vmatpush1.bf16.msra.mxu0 %v923
    %952 = vmatprep.subr.bf16.mxu0 0
    %953 = vmatpush1.bf16.msra.mxu0 %v922
    %954 = vmatprep.subr.bf16.mxu0 0
    %955 = vmatpush2.bf16.msra.mxu0 0
    %956 = vmatprep.subr.bf16.mxu0 0
    %957 = vmatpush2.bf16.msra.mxu0 0
    %958 = vmatprep.subr.bf16.mxu0 0
    %959 = vmatpush2.bf16.msra.mxu0 0
    %960 = vmatprep.subr.bf16.mxu0 0
    %961 = vmatpush2.bf16.msra.mxu0 0
    %962 = vmatprep.subr.bf16.mxu0 0
    %963 = vmatpush2.bf16.msra.mxu0 0
    %964 = vmatprep.subr.bf16.mxu0 0
    %965 = vmatpush2.bf16.msra.mxu0 0
    %966 = vmatprep.subr.bf16.mxu0 0
    %967 = vmatpush2.bf16.msra.mxu0 0
    %968 = vmatprep.subr.bf16.mxu0 0
    %969 = vmatpush2.bf16.msra.mxu0 0
    %970 = vmatprep.mubr.bf16.mxu0 0
    %971 = vmatmul.mubr.bf16.gmra.mxu0 %v859
    %v972 = vpop.f32.mrf.mxu0
    %v973 = vadd.f32 %v888, %v972
    %v974 = vpop.f32.mrf.mxu0
    %v975 = vpop.f32.mrf.mxu0
    %v976 = vadd.f32 %v888, %v975
    %v977 = vpop.f32.mrf.mxu0
    %978 = vmatprep.mubr.bf16.mxu0 0
    %979 = vmatmul.mubr.bf16.gmra.mxu0 %v860
    %v980 = vpop.f32.mrf.mxu0
    %v981 = vadd.f32 %v888, %v980
    %v982 = vpop.f32.mrf.mxu0
    %v983 = vpop.f32.mrf.mxu0
    %v984 = vadd.f32 %v888, %v983
    %v985 = vpop.f32.mrf.mxu0
    %986 = vmatprep.mubr.bf16.mxu0 0
    %987 = vmatmul.mubr.bf16.gmra.mxu0 %v861
    %v988 = vpop.f32.mrf.mxu0
    %v989 = vadd.f32 %v888, %v988
    %v990 = vpop.f32.mrf.mxu0
    %v991 = vpop.f32.mrf.mxu0
    %v992 = vadd.f32 %v888, %v991
    %v993 = vpop.f32.mrf.mxu0
    %994 = vmatprep.mubr.bf16.mxu0 0
    %995 = vmatmul.mubr.bf16.gmra.mxu0 %v862
    %v996 = vpop.f32.mrf.mxu0
    %v997 = vadd.f32 %v888, %v996
    %v998 = vpop.f32.mrf.mxu0
    %v999 = vpop.f32.mrf.mxu0
    %v1000 = vadd.f32 %v888, %v999
    %v1001 = vpop.f32.mrf.mxu0
    %1002 = vmatprep.mubr.bf16.mxu0 0
    %1003 = vmatmul.mubr.bf16.gmra.mxu0 %v863
    %v1004 = vpop.f32.mrf.mxu0
    %v1005 = vadd.f32 %v888, %v1004
    %v1006 = vpop.f32.mrf.mxu0
    %v1007 = vpop.f32.mrf.mxu0
    %v1008 = vadd.f32 %v888, %v1007
    %v1009 = vpop.f32.mrf.mxu0
    %1010 = vmatprep.mubr.bf16.mxu0 0
    %1011 = vmatmul.mubr.bf16.gmra.mxu0 %v864
    %v1012 = vpop.f32.mrf.mxu0
    %v1013 = vadd.f32 %v888, %v1012
    %v1014 = vpop.f32.mrf.mxu0
    %v1015 = vpop.f32.mrf.mxu0
    %v1016 = vadd.f32 %v888, %v1015
    %v1017 = vpop.f32.mrf.mxu0
    %1018 = vmatprep.mubr.bf16.mxu0 0
    %1019 = vmatmul.mubr.bf16.gmra.mxu0 %v865
    %v1020 = vpop.f32.mrf.mxu0
    %v1021 = vadd.f32 %v888, %v1020
    %v1022 = vpop.f32.mrf.mxu0
    %v1023 = vpop.f32.mrf.mxu0
    %v1024 = vadd.f32 %v888, %v1023
    %v1025 = vpop.f32.mrf.mxu0
    %1026 = vmatprep.mubr.bf16.mxu0 0
    %1027 = vmatmul.mubr.bf16.gmra.mxu0 %v866
    %v1028 = vpop.f32.mrf.mxu0
    %v1029 = vadd.f32 %v888, %v1028
    %v1030 = vpop.f32.mrf.mxu0
    %v1031 = vpop.f32.mrf.mxu0
    %v1032 = vadd.f32 %v888, %v1031
    %v1033 = vpop.f32.mrf.mxu0
    %1034 = vdwg.mxu0
    %v1035 = vmax.f32 %v973, 0.0
    %v1036 = vmax.f32 %v976, 0.0
    %v1037 = vmax.f32 %v981, 0.0
    %v1038 = vmax.f32 %v984, 0.0
    %v1039 = vmax.f32 %v989, 0.0
    %v1040 = vmax.f32 %v992, 0.0
    %v1041 = vmax.f32 %v997, 0.0
    %v1042 = vmax.f32 %v1000, 0.0
    %v1043 = vmax.f32 %v1005, 0.0
    %v1044 = vmax.f32 %v1008, 0.0
    %v1045 = vmax.f32 %v1013, 0.0
    %v1046 = vmax.f32 %v1016, 0.0
    %v1047 = vmax.f32 %v1021, 0.0
    %v1048 = vmax.f32 %v1024, 0.0
    %v1049 = vmax.f32 %v1029, 0.0
    %v1050 = vmax.f32 %v1032, 0.0
    %v1051 = vld [vmem:[%s10] sm:$0x1]
    %v1053 = vlaneseq
    %v1054 = vshrl.u32 %v1053, 7
    %v1055 = vsub.s32 0, %v1054
    %v1056 = vrot.slane %v1051, %v1055
    %v1058 = vmul.f32 %v1035, %v1056
    %v1059 = vmul.f32 %v1036, %v1056
    %v1060 = vmul.f32 %v1037, %v1056
    %v1061 = vmul.f32 %v1038, %v1056
    %v1062 = vmul.f32 %v1039, %v1056
    %v1063 = vmul.f32 %v1040, %v1056
    %v1064 = vmul.f32 %v1041, %v1056
    %v1065 = vmul.f32 %v1042, %v1056
    %v1066 = vmul.f32 %v1043, %v1056
    %v1067 = vmul.f32 %v1044, %v1056
    %v1068 = vmul.f32 %v1045, %v1056
    %v1069 = vmul.f32 %v1046, %v1056
    %v1070 = vmul.f32 %v1047, %v1056
    %v1071 = vmul.f32 %v1048, %v1056
    %v1072 = vmul.f32 %v1049, %v1056
    %v1073 = vmul.f32 %v1050, %v1056
    %1074 = vadd.xlane.f32.xlu0 %v1058
    %v1075 = vpop.xlane.xlu0 %1074
    %1076 = vadd.xlane.f32.xlu0 %v1059
    %v1077 = vpop.xlane.xlu0 %1076
    %1078 = vadd.xlane.f32.xlu0 %v1060
    %v1079 = vpop.xlane.xlu0 %1078
    %1080 = vadd.xlane.f32.xlu0 %v1061
    %v1081 = vpop.xlane.xlu0 %1080
    %1082 = vadd.xlane.f32.xlu0 %v1062
    %v1083 = vpop.xlane.xlu0 %1082
    %1084 = vadd.xlane.f32.xlu0 %v1063
    %v1085 = vpop.xlane.xlu0 %1084
    %1086 = vadd.xlane.f32.xlu0 %v1064
    %v1087 = vpop.xlane.xlu0 %1086
    %1088 = vadd.xlane.f32.xlu0 %v1065
    %v1089 = vpop.xlane.xlu0 %1088
    %1090 = vadd.xlane.f32.xlu0 %v1066
    %v1091 = vpop.xlane.xlu0 %1090
    %1092 = vadd.xlane.f32.xlu0 %v1067
    %v1093 = vpop.xlane.xlu0 %1092
    %1094 = vadd.xlane.f32.xlu0 %v1068
    %v1095 = vpop.xlane.xlu0 %1094
    %1096 = vadd.xlane.f32.xlu0 %v1069
    %v1097 = vpop.xlane.xlu0 %1096
    %1098 = vadd.xlane.f32.xlu0 %v1070
    %v1099 = vpop.xlane.xlu0 %1098
    %1100 = vadd.xlane.f32.xlu0 %v1071
    %v1101 = vpop.xlane.xlu0 %1100
    %1102 = vadd.xlane.f32.xlu0 %v1072
    %v1103 = vpop.xlane.xlu0 %1102
    %1104 = vadd.xlane.f32.xlu0 %v1073
    %v1105 = vpop.xlane.xlu0 %1104
    %v1106 = vld [vmem:[#allocation2] sm:$0x1]
    %s1107 = vtos %v1106
    %v1108 = vstv %s1107
    %v1109 = vadd.f32 %v1075, %v1108
    %v1110 = vadd.f32 %v1077, %v1108
    %v1111 = vadd.f32 %v1079, %v1108
    %v1112 = vadd.f32 %v1081, %v1108
    %v1113 = vadd.f32 %v1083, %v1108
    %v1114 = vadd.f32 %v1085, %v1108
    %v1115 = vadd.f32 %v1087, %v1108
    %v1116 = vadd.f32 %v1089, %v1108
    %v1117 = vadd.f32 %v1091, %v1108
    %v1118 = vadd.f32 %v1093, %v1108
    %v1119 = vadd.f32 %v1095, %v1108
    %v1120 = vadd.f32 %v1097, %v1108
    %v1121 = vadd.f32 %v1099, %v1108
    %v1122 = vadd.f32 %v1101, %v1108
    %v1123 = vadd.f32 %v1103, %v1108
    %v1124 = vadd.f32 %v1105, %v1108
    %v1125 = vlaneseq
    %v1126 = vand.u32 %v1125, 127
    %vm1127 = vcmp.eq.s32.totalorder %v1126, 4
    %v1128 = vsel %vm1127, %v1109, %v642
    %v1129 = vsel %vm1127, %v1110, %v643
    %v1130 = vsel %vm1127, %v1111, %v644
    %v1131 = vsel %vm1127, %v1112, %v645
    %v1132 = vsel %vm1127, %v1113, %v646
    %v1133 = vsel %vm1127, %v1114, %v647
    %v1134 = vsel %vm1127, %v1115, %v648
    %v1135 = vsel %vm1127, %v1116, %v649
    %v1136 = vsel %vm1127, %v1117, %v650
    %v1137 = vsel %vm1127, %v1118, %v651
    %v1138 = vsel %vm1127, %v1119, %v652
    %v1139 = vsel %vm1127, %v1120, %v653
    %v1140 = vsel %vm1127, %v1121, %v654
    %v1141 = vsel %vm1127, %v1122, %v655
    %v1142 = vsel %vm1127, %v1123, %v656
    %v1143 = vsel %vm1127, %v1124, %v657
    %v1144 = vpack.c.bf16 %v1129, %v1128
    %v1145 = vpack.c.bf16 %v1131, %v1130
    %v1146 = vpack.c.bf16 %v1133, %v1132
    %v1147 = vpack.c.bf16 %v1135, %v1134
    %v1148 = vpack.c.bf16 %v1137, %v1136
    %v1149 = vpack.c.bf16 %v1139, %v1138
    %v1150 = vpack.c.bf16 %v1141, %v1140
    %v1151 = vpack.c.bf16 %v1143, %v1142
    %v1160 = vunpack.c.l.b16 %v1144
    %v1161 = vunpack.c.h.b16 %v1144
    %v1162 = vunpack.c.l.b16 %v1145
    %v1163 = vunpack.c.h.b16 %v1145
    %v1164 = vunpack.c.l.b16 %v1146
    %v1165 = vunpack.c.h.b16 %v1146
    %v1166 = vunpack.c.l.b16 %v1147
    %v1167 = vunpack.c.h.b16 %v1147
    %v1168 = vunpack.c.l.b16 %v1148
    %v1169 = vunpack.c.h.b16 %v1148
    %v1170 = vunpack.c.l.b16 %v1149
    %v1171 = vunpack.c.h.b16 %v1149
    %v1172 = vunpack.c.l.b16 %v1150
    %v1173 = vunpack.c.h.b16 %v1150
    %v1174 = vunpack.c.l.b16 %v1151
    %v1175 = vunpack.c.h.b16 %v1151
    %v1176 = vpack.c.b16 %v1160, %v1160
    %v1177 = vpack.c.b16 %v1161, %v1161
    %v1178 = vpack.c.b16 %v1162, %v1162
    %v1179 = vpack.c.b16 %v1163, %v1163
    %v1180 = vpack.c.b16 %v1164, %v1164
    %v1181 = vpack.c.b16 %v1165, %v1165
    %v1182 = vpack.c.b16 %v1166, %v1166
    %v1183 = vpack.c.b16 %v1167, %v1167
    %v1184 = vpack.c.b16 %v1168, %v1168
    %v1185 = vpack.c.b16 %v1169, %v1169
    %v1186 = vpack.c.b16 %v1170, %v1170
    %v1187 = vpack.c.b16 %v1171, %v1171
    %v1188 = vpack.c.b16 %v1172, %v1172
    %v1189 = vpack.c.b16 %v1173, %v1173
    %v1190 = vpack.c.b16 %v1174, %v1174
    %v1191 = vpack.c.b16 %v1175, %v1175
    %1208 = vst [vmem:[%s12] sm:$0xf] %v1176
    %1209 = vst [vmem:[%s12 + $0x4] sm:$0xf] %v1177
    %1210 = vst [vmem:[%s12 + $0x8] sm:$0xf] %v1178
    %1211 = vst [vmem:[%s12 + $0xc] sm:$0xf] %v1179
    %1212 = vst [vmem:[%s12 + $0x10] sm:$0xf] %v1180
    %1213 = vst [vmem:[%s12 + $0x14] sm:$0xf] %v1181
    %1214 = vst [vmem:[%s12 + $0x18] sm:$0xf] %v1182
    %1215 = vst [vmem:[%s12 + $0x1c] sm:$0xf] %v1183
    %1216 = vst [vmem:[%s12 + $0x20] sm:$0xf] %v1184
    %1217 = vst [vmem:[%s12 + $0x24] sm:$0xf] %v1185
    %1218 = vst [vmem:[%s12 + $0x28] sm:$0xf] %v1186
    %1219 = vst [vmem:[%s12 + $0x2c] sm:$0xf] %v1187
    %1220 = vst [vmem:[%s12 + $0x30] sm:$0xf] %v1188
    %1221 = vst [vmem:[%s12 + $0x34] sm:$0xf] %v1189
    %1222 = vst [vmem:[%s12 + $0x38] sm:$0xf] %v1190
    %1223 = vst [vmem:[%s12 + $0x3c] sm:$0xf] %v1191
    // Predicated region
    $region58: #{_forward.1} parent=1 // pred_check
      _
    $region59: #{_forward.1} parent=1 // pred_check_branch
      %1225 = sbr.rel (0) target = $region61
    $region60: #{_forward.1} parent=1 // pred_region
      _
    $region61: #{_forward.1} parent=1 // pred_fallthru
      _
    // Predicated region
    $region62: #{_forward.1} parent=1 // pred_check
      _
    $region63: #{_forward.1} parent=1 // pred_check_branch
      %1227 = sbr.rel (0) target = $region65
    $region64: #{_forward.1} parent=1 // pred_region
      _
    $region65: #{_forward.1} parent=1 // pred_fallthru
      _
    %1228 = vsyncpa [#allocation4], 1
    %1229 = vsyncpa [#allocation6], 1

</llo_original>
